<compile_context>
chip_gen: v7x
topology: tpu7x:2x2x1
jax: 0.10.0
libtpu: 0.0.40
codegen_flags: <defaults>
</compile_context>

<pallas_src>
import jax
import jax.numpy as jnp
from jax.experimental import pallas as pl
from jax.experimental.pallas import tpu as pltpu


def _round_up(x, m):
    return ((x + m - 1) // m) * m


# ---------------------------------------------------------------------------
# Kernel: three back-to-back matmuls; stream fusion and the dueling combine are
# already folded into the packed weights, so the body is pure dot/bias/relu.
# ---------------------------------------------------------------------------
def dueling_q_kernel(x_ref, w1_ref, b1_ref, w2_ref, b2_ref, w3_ref, b3_ref,
                     out_ref):
    # fc1 + relu : bf16 MXU inputs (x already bf16), f32 accumulation.
    h = jnp.dot(x_ref[...], w1_ref[...],
                preferred_element_type=jnp.float32) + b1_ref[...]
    h = jnp.maximum(h, 0.0)

    # fused fc2_val || fc2_adv + relu : one lane-full (N = 2*F2 = 128) matmul.
    h2 = jnp.dot(h.astype(w2_ref.dtype), w2_ref[...],
                 preferred_element_type=jnp.float32) + b2_ref[...]
    h2 = jnp.maximum(h2, 0.0)

    # fc3 with the dueling combine folded into the packed weights:
    #   out = h2 @ [W3v ; W3a @ (I - J/A)] + (b3v + b3a @ (I - J/A))
    # -> single dot + bias straight into out_ref (no slice / cross-lane mean).
    out_ref[...] = (jnp.dot(h2.astype(w3_ref.dtype), w3_ref[...],
                            preferred_element_type=jnp.float32)
                    + b3_ref[...]).astype(out_ref.dtype)


# ---------------------------------------------------------------------------
# Host-side parameter packing (fusion + free zero-padding + combine folding)
# ---------------------------------------------------------------------------
def pack_params(p, *, compute_dtype=jnp.bfloat16):
    """Fuse the two streams, pad fc1 width to a multiple of 128, and fold the
    dueling combine into fc3.  Input `p` holds un-fused weights in [in, out]
    layout and biases [1, out]."""
    S, H1 = p["w1"].shape          # state_size, fc1_units
    F2 = p["w2v"].shape[1]         # fc2_units
    A = p["w3v"].shape[1]          # action_size

    # 128-lane alignment (v5e MXU is 128-wide; padding to 256 would only add
    # zero-FLOP passes on every generation).
    H1p = _round_up(H1, 128)

    w1 = jnp.zeros((S, H1p), jnp.float32).at[:, :H1].set(p["w1"])
    b1 = jnp.zeros((1, H1p), jnp.float32).at[:, :H1].set(p["b1"])

    # fused fc2: columns [0, F2) = value stream, [F2, 2*F2) = advantage stream.
    w2 = jnp.zeros((H1p, 2 * F2), jnp.float32)
    w2 = w2.at[:H1, :F2].set(p["w2v"]).at[:H1, F2:].set(p["w2a"])
    b2 = jnp.concatenate([p["b2v"], p["b2a"]], axis=1)

    # Fold the dueling combine: adv - mean(adv) = adv @ (I - J/A)  (exact).
    C = jnp.eye(A, dtype=jnp.float32) - jnp.full((A, A), 1.0 / A, jnp.float32)
    w3 = jnp.concatenate([p["w3v"], p["w3a"] @ C], axis=0)   # [2*F2, A]
    b3 = p["b3v"] + p["b3a"] @ C                              # [1, A]

    return dict(
        w1=w1.astype(compute_dtype), b1=b1,
        w2=w2.astype(compute_dtype), b2=b2,
        # fc3 is tiny (K=2*F2, N=A): keep f32 for closer parity, ~free.
        w3=w3, b3=b3,
    )


# ---------------------------------------------------------------------------
# Wrapper
# ---------------------------------------------------------------------------
def _choose_row_tile(B, block_rows):
    # Cap TB at ceil(B/2) rounded up to 8 so any B > 8 gives >= 2 grid steps
    # (both v7x TensorCores get work via dimension_semantics=("parallel",)),
    # then cap at block_rows so VMEM/per-step overhead stays balanced.
    tb = min(_round_up(pl.cdiv(B, 2), 8), block_rows)
    return B if tb >= B else tb


def dueling_q_forward(state, packed, *, block_rows=2048):
    """state: [B, state_size]; packed: output of pack_params."""
    B, S = state.shape
    A = packed["w3"].shape[1]
    compute_dtype = packed["w1"].dtype

    # Stream the only per-step HBM input as bf16: halves its DMA bytes and
    # removes the in-kernel [TB, S] cast.  Numerics unchanged (the matmul
    # already consumed bf16 x).
    if state.dtype != compute_dtype:
        state = state.astype(compute_dtype)

    TB = _choose_row_tile(B, block_rows)
    grid = (pl.cdiv(B, TB),)

    row_map = lambda i: (i, 0)
    const_map = lambda i: (0, 0)       # weights stay VMEM-resident, no re-DMA

    weights = (packed["w1"], packed["b1"],
               packed["w2"], packed["b2"],
               packed["w3"], packed["b3"])

    in_specs = [pl.BlockSpec((TB, S), row_map)]
    # Note: if fc widths are scaled up a lot, single-buffering these resident
    # weights (pipeline_mode=pl.Buffered(1)) buys VMEM back for a larger TB;
    # at 64/128-wide layers the double-buffered copies are negligible.
    in_specs += [pl.BlockSpec(w.shape, const_map) for w in weights]
    out_specs = pl.BlockSpec((TB, A), row_map)

    flops = 2 * B * (S * packed["w1"].shape[1]
                     + packed["w2"].shape[0] * packed["w2"].shape[1]
                     + packed["w3"].shape[0] * packed["w3"].shape[1])
    bytes_accessed = (int(state.size) * state.dtype.itemsize
                      + B * A * 4
                      + sum(int(w.size) * w.dtype.itemsize for w in weights))

    return pl.pallas_call(
        dueling_q_kernel,
        out_shape=jax.ShapeDtypeStruct((B, A), jnp.float32),
        grid=grid,
        in_specs=in_specs,
        out_specs=out_specs,
        compiler_params=pltpu.CompilerParams(
            dimension_semantics=("parallel",),
            vmem_limit_bytes=32 * 1024 * 1024),
        cost_estimate=pl.CostEstimate(flops=flops, transcendentals=0,
                                      bytes_accessed=bytes_accessed),
    )(state, *weights)


# ---------------------------------------------------------------------------
# Init + pure-JAX reference (un-fused, f32) for correctness
# ---------------------------------------------------------------------------
def init_params(key, state_size, action_size, fc1_units=64, fc2_units=64):
    """PyTorch-Linear-style uniform init; weights stored as [in, out]."""
    def linear(k, fan_in, fan_out):
        kw, kb = jax.random.split(k)
        bound = 1.0 / jnp.sqrt(fan_in)
        w = jax.random.uniform(kw, (fan_in, fan_out), jnp.float32, -bound, bound)
        b = jax.random.uniform(kb, (1, fan_out), jnp.float32, -bound, bound)
        return w, b

    keys = jax.random.split(key, 5)
    w1, b1 = linear(keys[0], state_size, fc1_units)
    w2v, b2v = linear(keys[1], fc1_units, fc2_units)
    w2a, b2a = linear(keys[2], fc1_units, fc2_units)
    w3v, b3v = linear(keys[3], fc2_units, action_size)
    w3a, b3a = linear(keys[4], fc2_units, action_size)
    return dict(w1=w1, b1=b1, w2v=w2v, b2v=b2v, w2a=w2a, b2a=b2a,
                w3v=w3v, b3v=b3v, w3a=w3a, b3a=b3a)


def reference_forward(state, p):
    h = jnp.maximum(state @ p["w1"] + p["b1"], 0.0)
    val = jnp.maximum(h @ p["w2v"] + p["b2v"], 0.0)
    adv = jnp.maximum(h @ p["w2a"] + p["b2a"], 0.0)
    val = val @ p["w3v"] + p["b3v"]
    adv = adv @ p["w3a"] + p["b3a"]
    return val + adv - jnp.mean(adv, axis=1, keepdims=True)


if __name__ == "__main__":
    key = jax.random.PRNGKey(0)
    k_state, k_params, k_state2 = jax.random.split(key, 3)

    state_size = 16
    action_size = 8

    params = init_params(k_params, state_size, action_size,
                         fc1_units=64, fc2_units=64)
    packed = pack_params(params, compute_dtype=jnp.bfloat16)

    # --- test 1: small batch, single grid step ------------------------------
    batch = 8
    state = jax.random.normal(k_state, (batch, state_size), jnp.float32)
    out = jax.block_until_ready(dueling_q_forward(state, packed))
    ref = reference_forward(state, params)
    assert out.shape == (batch, action_size)
    # bf16 MXU inputs with f32 accumulation vs f32 reference -> relaxed tol.
    assert jnp.allclose(out, ref, atol=3e-2, rtol=3e-2), "mismatch (single tile)"

    # --- test 2: multi-step grid with a ragged last row tile ----------------
    batch2 = 20
    state2 = jax.random.normal(k_state2, (batch2, state_size), jnp.float32)
    out2 = jax.block_until_ready(
        dueling_q_forward(state2, packed, block_rows=8))
    ref2 = reference_forward(state2, params)
    assert out2.shape == (batch2, action_size)
    assert jnp.allclose(out2, ref2, atol=3e-2, rtol=3e-2), "mismatch (ragged tile)"

    print("KERNEL_OK")
</pallas_src>

<mosaic_0001>
module attributes {stable_mosaic.version = 11 : i64} {
  func.func @dueling_q_kernel(%arg0: i32, %arg1: memref<8x16xbf16, #tpu.memory_space<vmem>>, %arg2: memref<16x128xbf16, #tpu.memory_space<vmem>>, %arg3: memref<1x128xf32, #tpu.memory_space<vmem>>, %arg4: memref<128x128xbf16, #tpu.memory_space<vmem>>, %arg5: memref<1x128xf32, #tpu.memory_space<vmem>>, %arg6: memref<128x8xf32, #tpu.memory_space<vmem>>, %arg7: memref<1x8xf32, #tpu.memory_space<vmem>>, %arg8: memref<8x8xf32, #tpu.memory_space<vmem>>) attributes {dimension_semantics = [#tpu.dimension_semantics<parallel>], iteration_bounds = array<i64: 1>, scalar_prefetch = 0 : i64, scratch_operands = 0 : i64, tpu.core_type = #tpu.core_type<tc>, window_params = [{transform_indices = @transform_0, window_bounds = array<i64: 8, 16>}, {pipeline_mode = #tpu.pipeline_mode<synchronous>, transform_indices = @transform_1, window_bounds = array<i64: 16, 128>}, {pipeline_mode = #tpu.pipeline_mode<synchronous>, transform_indices = @transform_2, window_bounds = array<i64: 1, 128>}, {pipeline_mode = #tpu.pipeline_mode<synchronous>, transform_indices = @transform_3, window_bounds = array<i64: 128, 128>}, {pipeline_mode = #tpu.pipeline_mode<synchronous>, transform_indices = @transform_4, window_bounds = array<i64: 1, 128>}, {pipeline_mode = #tpu.pipeline_mode<synchronous>, transform_indices = @transform_5, window_bounds = array<i64: 128, 8>}, {pipeline_mode = #tpu.pipeline_mode<synchronous>, transform_indices = @transform_6, window_bounds = array<i64: 1, 8>}, {transform_indices = @transform_7, window_bounds = array<i64: 8, 8>}]} {
    %c0 = arith.constant 0 : index
    %c0_0 = arith.constant 0 : index
    %0 = vector.load %arg1[%c0, %c0_0] : memref<8x16xbf16, #tpu.memory_space<vmem>>, vector<8x16xbf16>
    %c0_1 = arith.constant 0 : index
    %c0_2 = arith.constant 0 : index
    %1 = vector.load %arg2[%c0_1, %c0_2] : memref<16x128xbf16, #tpu.memory_space<vmem>>, vector<16x128xbf16>
    %cst = arith.constant dense<0.000000e+00> : vector<8x128xf32>
    %2 = tpu.matmul %0, %1, %cst {dimension_numbers = #tpu.dot_dimension_numbers<[1], [0], [0], [1], [0, 0, 1, 1], [], []>} : vector<8x16xbf16>, vector<16x128xbf16>, vector<8x128xf32> -> vector<8x128xf32>
    %c0_3 = arith.constant 0 : index
    %c0_4 = arith.constant 0 : index
    %3 = vector.load %arg3[%c0_3, %c0_4] : memref<1x128xf32, #tpu.memory_space<vmem>>, vector<1x128xf32>
    %4 = vector.broadcast %3 : vector<1x128xf32> to vector<8x128xf32>
    %5 = arith.addf %2, %4 : vector<8x128xf32>
    %cst_5 = arith.constant 0.000000e+00 : f32
    %6 = vector.broadcast %cst_5 : f32 to vector<8x128xf32>
    %7 = arith.maximumf %5, %6 : vector<8x128xf32>
    %8 = arith.truncf %7 : vector<8x128xf32> to vector<8x128xbf16>
    %c0_6 = arith.constant 0 : index
    %c0_7 = arith.constant 0 : index
    %9 = vector.load %arg4[%c0_6, %c0_7] : memref<128x128xbf16, #tpu.memory_space<vmem>>, vector<128x128xbf16>
    %cst_8 = arith.constant dense<0.000000e+00> : vector<8x128xf32>
    %10 = tpu.matmul %8, %9, %cst_8 {dimension_numbers = #tpu.dot_dimension_numbers<[1], [0], [0], [1], [0, 0, 1, 1], [], []>} : vector<8x128xbf16>, vector<128x128xbf16>, vector<8x128xf32> -> vector<8x128xf32>
    %c0_9 = arith.constant 0 : index
    %c0_10 = arith.constant 0 : index
    %11 = vector.load %arg5[%c0_9, %c0_10] : memref<1x128xf32, #tpu.memory_space<vmem>>, vector<1x128xf32>
    %12 = vector.broadcast %11 : vector<1x128xf32> to vector<8x128xf32>
    %13 = arith.addf %10, %12 : vector<8x128xf32>
    %cst_11 = arith.constant 0.000000e+00 : f32
    %14 = vector.broadcast %cst_11 : f32 to vector<8x128xf32>
    %15 = arith.maximumf %13, %14 : vector<8x128xf32>
    %c0_12 = arith.constant 0 : index
    %c0_13 = arith.constant 0 : index
    %16 = vector.load %arg6[%c0_12, %c0_13] : memref<128x8xf32, #tpu.memory_space<vmem>>, vector<128x8xf32>
    %cst_14 = arith.constant dense<0.000000e+00> : vector<8x8xf32>
    %17 = tpu.matmul %15, %16, %cst_14 {dimension_numbers = #tpu.dot_dimension_numbers<[1], [0], [0], [1], [0, 0, 1, 1], [], []>} : vector<8x128xf32>, vector<128x8xf32>, vector<8x8xf32> -> vector<8x8xf32>
    %c0_15 = arith.constant 0 : index
    %c0_16 = arith.constant 0 : index
    %18 = vector.load %arg7[%c0_15, %c0_16] : memref<1x8xf32, #tpu.memory_space<vmem>>, vector<1x8xf32>
    %19 = vector.broadcast %18 : vector<1x8xf32> to vector<8x8xf32>
    %20 = arith.addf %17, %19 : vector<8x8xf32>
    %c0_17 = arith.constant 0 : index
    %c0_18 = arith.constant 0 : index
    %21 = vector.load %arg8[%c0_17, %c0_18] : memref<8x8xf32, #tpu.memory_space<vmem>>, vector<8x8xf32>
    tpu.vector_store %arg8[%c0_17, %c0_18], %20 {strides = array<i32>} : memref<8x8xf32, #tpu.memory_space<vmem>>, vector<8x8xf32>,
    return
  }
  func.func @transform_0(%arg0: i32) -> (i32, i32) {
    %c0_i32 = arith.constant 0 : i32
    %c0_i32_0 = arith.constant 0 : i32
    return %arg0, %c0_i32 : i32, i32
  }
  func.func @transform_1(%arg0: i32) -> (i32, i32) {
    %c0_i32 = arith.constant 0 : i32
    %c0_i32_0 = arith.constant 0 : i32
    %c0_i32_1 = arith.constant 0 : i32
    return %c0_i32, %c0_i32_0 : i32, i32
  }
  func.func @transform_2(%arg0: i32) -> (i32, i32) {
    %c0_i32 = arith.constant 0 : i32
    %c0_i32_0 = arith.constant 0 : i32
    %c0_i32_1 = arith.constant 0 : i32
    return %c0_i32, %c0_i32_0 : i32, i32
  }
  func.func @transform_3(%arg0: i32) -> (i32, i32) {
    %c0_i32 = arith.constant 0 : i32
    %c0_i32_0 = arith.constant 0 : i32
    %c0_i32_1 = arith.constant 0 : i32
    return %c0_i32, %c0_i32_0 : i32, i32
  }
  func.func @transform_4(%arg0: i32) -> (i32, i32) {
    %c0_i32 = arith.constant 0 : i32
    %c0_i32_0 = arith.constant 0 : i32
    %c0_i32_1 = arith.constant 0 : i32
    return %c0_i32, %c0_i32_0 : i32, i32
  }
  func.func @transform_5(%arg0: i32) -> (i32, i32) {
    %c0_i32 = arith.constant 0 : i32
    %c0_i32_0 = arith.constant 0 : i32
    %c0_i32_1 = arith.constant 0 : i32
    return %c0_i32, %c0_i32_0 : i32, i32
  }
  func.func @transform_6(%arg0: i32) -> (i32, i32) {
    %c0_i32 = arith.constant 0 : i32
    %c0_i32_0 = arith.constant 0 : i32
    %c0_i32_1 = arith.constant 0 : i32
    return %c0_i32, %c0_i32_0 : i32, i32
  }
  func.func @transform_7(%arg0: i32) -> (i32, i32) {
    %c0_i32 = arith.constant 0 : i32
    %c0_i32_0 = arith.constant 0 : i32
    return %arg0, %c0_i32 : i32, i32
  }
}

</mosaic_0001>

<llo_original>
// kernel: tpu_custom_call.1
$region0: #{tpu_custom_call.1}
  #allocation0 [shape = 'u32[]', space=smem, size = 0x4, offset = 0x4, fixed_abs, tag = 'smem constant byte address 0x4 - core index']
  #allocation1 [shape = 'u32[144,128]{1,0:T(1,128)}', space=vmem, size = 0x12000, scoped, tag = 'internal scratch']
  %s0 = inlined_call_operand.vmem [shape: bf16[8,16], index: 0, kind: input, shape index: {}]
  %s1 = inlined_call_operand.vmem [shape: bf16[16,128], index: 1, kind: input, shape index: {}]
  %s2 = inlined_call_operand.vmem [shape: f32[1,128], index: 2, kind: input, shape index: {}]
  %s3 = inlined_call_operand.vmem [shape: bf16[128,128], index: 3, kind: input, shape index: {}]
  %s4 = inlined_call_operand.vmem [shape: f32[1,128], index: 4, kind: input, shape index: {}]
  %s5 = inlined_call_operand.vmem [shape: f32[128,8], index: 5, kind: input, shape index: {}]
  %s6 = inlined_call_operand.vmem [shape: f32[1,8], index: 6, kind: input, shape index: {}]
  %s7 = inlined_call_operand.hbm [shape: f32[8,8], index: 7, kind: output, shape index: {}]
  %s8 = sld [smem:[#allocation0]]
  $region38: #{tpu_custom_call.1} parent=0
    _
  %s10 = ssub.s32 1, %s8
  %s11 = scalar_select 0, %s10, %s8
  $region1: #{tpu_custom_call.1} parent=0
    #allocation2 [shape = 'u8[4096]{0}', space=vmem, size = 0x1000, scoped, tag = 'output window, operand 0, single buffered']
    #allocation3 [shape = 's32[1]{0}', space=sflag, size = 0x4, scoped, tag = 'scoped memory for tpu_custom_call.1']
    %12 = vsyncpa [#allocation3], 0
    // Predicated region
    $region2: #{tpu_custom_call.1} parent=1 // pred_check
      _
    $region3: #{tpu_custom_call.1} parent=1 // pred_check_branch
      %14 = sbr.rel (0) target = $region5
    $region4: #{tpu_custom_call.1} parent=1 // pred_region
      _
    $region5: #{tpu_custom_call.1} parent=1 // pred_fallthru
      _
    // Predicated region
    $region6: #{tpu_custom_call.1} parent=1 // pred_check
      _
    $region7: #{tpu_custom_call.1} parent=1 // pred_check_branch
      %16 = sbr.rel (0) target = $region9
    $region8: #{tpu_custom_call.1} parent=1 // pred_region
      _
    $region9: #{tpu_custom_call.1} parent=1 // pred_fallthru
      _
    // Predicated region
    $region10: #{tpu_custom_call.1} parent=1 // pred_check
      _
    $region11: #{tpu_custom_call.1} parent=1 // pred_check_branch
      %18 = sbr.rel (0) target = $region13
    $region12: #{tpu_custom_call.1} parent=1 // pred_region
      _
    $region13: #{tpu_custom_call.1} parent=1 // pred_fallthru
      _
    // Predicated region
    $region14: #{tpu_custom_call.1} parent=1 // pred_check
      _
    $region15: #{tpu_custom_call.1} parent=1 // pred_check_branch
      %20 = sbr.rel (0) target = $region17
    $region16: #{tpu_custom_call.1} parent=1 // pred_region
      _
    $region17: #{tpu_custom_call.1} parent=1 // pred_fallthru
      _
    // Predicated region
    $region18: #{tpu_custom_call.1} parent=1 // pred_check
      _
    $region19: #{tpu_custom_call.1} parent=1 // pred_check_branch
      %22 = sbr.rel (0) target = $region21
    $region20: #{tpu_custom_call.1} parent=1 // pred_region
      _
    $region21: #{tpu_custom_call.1} parent=1 // pred_fallthru
      _
    // Predicated region
    $region22: #{tpu_custom_call.1} parent=1 // pred_check
      _
    $region23: #{tpu_custom_call.1} parent=1 // pred_check_branch
      %24 = sbr.rel (0) target = $region25
    $region24: #{tpu_custom_call.1} parent=1 // pred_region
      _
    $region25: #{tpu_custom_call.1} parent=1 // pred_fallthru
      _
    // Predicated region
    $region26: #{tpu_custom_call.1} parent=1 // pred_check
      _
    $region27: #{tpu_custom_call.1} parent=1 // pred_check_branch
      %26 = sbr.rel (0) target = $region29
    $region28: #{tpu_custom_call.1} parent=1 // pred_region
      _
    $region29: #{tpu_custom_call.1} parent=1 // pred_fallthru
      _
    %v28 = vld [vmem:[%s0] sm:$0xf]
    %v29 = vld [vmem:[%s1] sm:$0xf]
    %v30 = vld [vmem:[%s1 + $0x4] sm:$0xf]
    %v31 = vld [vmem:[%s2] sm:$0x1]
    %v33 = vlaneseq
    %v34 = vshrl.u32 %v33, 7
    %v35 = vsub.s32 0, %v34
    %v36 = vrot.slane %v31, %v35
    %v40 = vunpack.c.l.b16 %v29
    %v41 = vunpack.c.l.b16 %v30
    %v42 = vpack.c.b16 %v41, %v40
    %vm44 = vcmask 130048
    %v46 = vsel %vm44, %v28, 0
    %48 = vmatprep.subr.bf16.mxu0 0
    %49 = vmatpush1.bf16.msra.mxu0 %v42
    %50 = vmatprep.subr.bf16.mxu0 0
    %51 = vmatpush1.bf16.msra.mxu0 0
    %52 = vmatprep.subr.bf16.mxu0 0
    %53 = vmatpush1.bf16.msra.mxu0 0
    %54 = vmatprep.subr.bf16.mxu0 0
    %55 = vmatpush1.bf16.msra.mxu0 0
    %56 = vmatprep.subr.bf16.mxu0 0
    %57 = vmatpush1.bf16.msra.mxu0 0
    %58 = vmatprep.subr.bf16.mxu0 0
    %59 = vmatpush1.bf16.msra.mxu0 0
    %60 = vmatprep.subr.bf16.mxu0 0
    %61 = vmatpush1.bf16.msra.mxu0 0
    %62 = vmatprep.subr.bf16.mxu0 0
    %63 = vmatpush1.bf16.msra.mxu0 0
    %64 = vmatprep.subr.bf16.mxu0 0
    %65 = vmatpush1.bf16.msra.mxu0 0
    %66 = vmatprep.subr.bf16.mxu0 0
    %67 = vmatpush1.bf16.msra.mxu0 0
    %68 = vmatprep.subr.bf16.mxu0 0
    %69 = vmatpush1.bf16.msra.mxu0 0
    %70 = vmatprep.subr.bf16.mxu0 0
    %71 = vmatpush1.bf16.msra.mxu0 0
    %72 = vmatprep.subr.bf16.mxu0 0
    %73 = vmatpush1.bf16.msra.mxu0 0
    %74 = vmatprep.subr.bf16.mxu0 0
    %75 = vmatpush1.bf16.msra.mxu0 0
    %76 = vmatprep.subr.bf16.mxu0 0
    %77 = vmatpush1.bf16.msra.mxu0 0
    %78 = vmatprep.subr.bf16.mxu0 0
    %79 = vmatpush1.bf16.msra.mxu0 0
    %80 = vmatprep.mubr.bf16.mxu0 0
    %81 = vmatmul.mubr.bf16.gmra.mrb[0].mxu0 %v46
    %v82 = vpop.f32.mrb[0].mxu0
    %v83 = vadd.f32 %v36, %v82
    %v84 = vpop.f32.mrb[0].mxu0
    %v85 = vpop.f32.mrb[0].mxu0
    %v86 = vpop.f32.mrb[0].mxu0
    %87 = vdwg.mxu0
    %v88 = vmax.f32 %v83, 0.0
    %v89 = vpack.c.bf16 %v88, %v88
    %v90 = vld [vmem:[%s3] sm:$0xf]
    %v91 = vld [vmem:[%s3 + $0x4] sm:$0xf]
    %v92 = vld [vmem:[%s3 + $0x8] sm:$0xf]
    %v93 = vld [vmem:[%s3 + $0xc] sm:$0xf]
    %v94 = vld [vmem:[%s3 + $0x10] sm:$0xf]
    %v95 = vld [vmem:[%s3 + $0x14] sm:$0xf]
    %v96 = vld [vmem:[%s3 + $0x18] sm:$0xf]
    %v97 = vld [vmem:[%s3 + $0x1c] sm:$0xf]
    %v98 = vld [vmem:[%s3 + $0x20] sm:$0xf]
    %v99 = vld [vmem:[%s3 + $0x24] sm:$0xf]
    %v100 = vld [vmem:[%s3 + $0x28] sm:$0xf]
    %v101 = vld [vmem:[%s3 + $0x2c] sm:$0xf]
    %v102 = vld [vmem:[%s3 + $0x30] sm:$0xf]
    %v103 = vld [vmem:[%s3 + $0x34] sm:$0xf]
    %v104 = vld [vmem:[%s3 + $0x38] sm:$0xf]
    %v105 = vld [vmem:[%s3 + $0x3c] sm:$0xf]
    %v106 = vld [vmem:[%s4] sm:$0x1]
    %v108 = vlaneseq
    %v109 = vshrl.u32 %v108, 7
    %v110 = vsub.s32 0, %v109
    %v111 = vrot.slane %v106, %v110
    %v129 = vunpack.c.l.b16 %v90
    %v130 = vunpack.c.l.b16 %v91
    %v131 = vunpack.c.l.b16 %v92
    %v132 = vunpack.c.l.b16 %v93
    %v133 = vunpack.c.l.b16 %v94
    %v134 = vunpack.c.l.b16 %v95
    %v135 = vunpack.c.l.b16 %v96
    %v136 = vunpack.c.l.b16 %v97
    %v137 = vunpack.c.l.b16 %v98
    %v138 = vunpack.c.l.b16 %v99
    %v139 = vunpack.c.l.b16 %v100
    %v140 = vunpack.c.l.b16 %v101
    %v141 = vunpack.c.l.b16 %v102
    %v142 = vunpack.c.l.b16 %v103
    %v143 = vunpack.c.l.b16 %v104
    %v144 = vunpack.c.l.b16 %v105
    %v145 = vpack.c.b16 %v130, %v129
    %v146 = vpack.c.b16 %v132, %v131
    %v147 = vpack.c.b16 %v134, %v133
    %v148 = vpack.c.b16 %v136, %v135
    %v149 = vpack.c.b16 %v138, %v137
    %v150 = vpack.c.b16 %v140, %v139
    %v151 = vpack.c.b16 %v142, %v141
    %v152 = vpack.c.b16 %v144, %v143
    %161 = vmatprep.subr.bf16.mxu0 0
    %162 = vmatpush1.bf16.msra.mxu0 %v145
    %163 = vmatprep.subr.bf16.mxu0 0
    %164 = vmatpush1.bf16.msra.mxu0 %v146
    %165 = vmatprep.subr.bf16.mxu0 0
    %166 = vmatpush1.bf16.msra.mxu0 %v147
    %167 = vmatprep.subr.bf16.mxu0 0
    %168 = vmatpush1.bf16.msra.mxu0 %v148
    %169 = vmatprep.subr.bf16.mxu0 0
    %170 = vmatpush1.bf16.msra.mxu0 %v149
    %171 = vmatprep.subr.bf16.mxu0 0
    %172 = vmatpush1.bf16.msra.mxu0 %v150
    %173 = vmatprep.subr.bf16.mxu0 0
    %174 = vmatpush1.bf16.msra.mxu0 %v151
    %175 = vmatprep.subr.bf16.mxu0 0
    %176 = vmatpush1.bf16.msra.mxu0 %v152
    %177 = vmatprep.subr.bf16.mxu0 0
    %178 = vmatpush1.bf16.msra.mxu0 0
    %179 = vmatprep.subr.bf16.mxu0 0
    %180 = vmatpush1.bf16.msra.mxu0 0
    %181 = vmatprep.subr.bf16.mxu0 0
    %182 = vmatpush1.bf16.msra.mxu0 0
    %183 = vmatprep.subr.bf16.mxu0 0
    %184 = vmatpush1.bf16.msra.mxu0 0
    %185 = vmatprep.subr.bf16.mxu0 0
    %186 = vmatpush1.bf16.msra.mxu0 0
    %187 = vmatprep.subr.bf16.mxu0 0
    %188 = vmatpush1.bf16.msra.mxu0 0
    %189 = vmatprep.subr.bf16.mxu0 0
    %190 = vmatpush1.bf16.msra.mxu0 0
    %191 = vmatprep.subr.bf16.mxu0 0
    %192 = vmatpush1.bf16.msra.mxu0 0
    %193 = vmatprep.mubr.bf16.mxu0 0
    %194 = vmatmul.mubr.bf16.gmra.mrb[0].mxu0 %v89
    %v195 = vpop.f32.mrb[0].mxu0
    %v196 = vadd.f32 %v111, %v195
    %v197 = vpop.f32.mrb[0].mxu0
    %v198 = vpop.f32.mrb[0].mxu0
    %v199 = vpop.f32.mrb[0].mxu0
    %200 = vdwg.mxu0
    %v201 = vmax.f32 %v196, 0.0
    %v202 = vld [vmem:[%s5] sm:$0xff]
    %v203 = vld [vmem:[%s5 + $0x8] sm:$0xff]
    %v204 = vld [vmem:[%s5 + $0x10] sm:$0xff]
    %v205 = vld [vmem:[%s5 + $0x18] sm:$0xff]
    %v206 = vld [vmem:[%s5 + $0x20] sm:$0xff]
    %v207 = vld [vmem:[%s5 + $0x28] sm:$0xff]
    %v208 = vld [vmem:[%s5 + $0x30] sm:$0xff]
    %v209 = vld [vmem:[%s5 + $0x38] sm:$0xff]
    %v210 = vld [vmem:[%s5 + $0x40] sm:$0xff]
    %v211 = vld [vmem:[%s5 + $0x48] sm:$0xff]
    %v212 = vld [vmem:[%s5 + $0x50] sm:$0xff]
    %v213 = vld [vmem:[%s5 + $0x58] sm:$0xff]
    %v214 = vld [vmem:[%s5 + $0x60] sm:$0xff]
    %v215 = vld [vmem:[%s5 + $0x68] sm:$0xff]
    %v216 = vld [vmem:[%s5 + $0x70] sm:$0xff]
    %v217 = vld [vmem:[%s5 + $0x78] sm:$0xff]
    %v218 = vld [vmem:[%s6] sm:$0x1]
    %v220 = vlaneseq
    %v221 = vshrl.u32 %v220, 7
    %v222 = vsub.s32 0, %v221
    %v223 = vrot.slane %v218, %v222
    %225 = vmatprep.subr.mxu0 0.0
    %226 = vmatpush1.msra.mxu0 %v202
    %227 = vmatprep.subr.mxu0 0.0
    %228 = vmatpush1.msra.mxu0 %v203
    %229 = vmatprep.subr.mxu0 0.0
    %230 = vmatpush1.msra.mxu0 %v204
    %231 = vmatprep.subr.mxu0 0.0
    %232 = vmatpush1.msra.mxu0 %v205
    %233 = vmatprep.subr.mxu0 0.0
    %234 = vmatpush1.msra.mxu0 %v206
    %235 = vmatprep.subr.mxu0 0.0
    %236 = vmatpush1.msra.mxu0 %v207
    %237 = vmatprep.subr.mxu0 0.0
    %238 = vmatpush1.msra.mxu0 %v208
    %239 = vmatprep.subr.mxu0 0.0
    %240 = vmatpush1.msra.mxu0 %v209
    %241 = vmatprep.subr.mxu0 0.0
    %242 = vmatpush1.msra.mxu0 %v210
    %243 = vmatprep.subr.mxu0 0.0
    %244 = vmatpush1.msra.mxu0 %v211
    %245 = vmatprep.subr.mxu0 0.0
    %246 = vmatpush1.msra.mxu0 %v212
    %247 = vmatprep.subr.mxu0 0.0
    %248 = vmatpush1.msra.mxu0 %v213
    %249 = vmatprep.subr.mxu0 0.0
    %250 = vmatpush1.msra.mxu0 %v214
    %251 = vmatprep.subr.mxu0 0.0
    %252 = vmatpush1.msra.mxu0 %v215
    %253 = vmatprep.subr.mxu0 0.0
    %254 = vmatpush1.msra.mxu0 %v216
    %255 = vmatprep.subr.mxu0 0.0
    %256 = vmatpush1.msra.mxu0 %v217
    %257 = vmatprep.subr.mxu0 0.0
    %258 = vmatpush1.msra.mxu0 0.0
    %259 = vmatprep.subr.mxu0 0.0
    %260 = vmatpush1.msra.mxu0 0.0
    %261 = vmatprep.subr.mxu0 0.0
    %262 = vmatpush1.msra.mxu0 0.0
    %263 = vmatprep.subr.mxu0 0.0
    %264 = vmatpush1.msra.mxu0 0.0
    %265 = vmatprep.subr.mxu0 0.0
    %266 = vmatpush1.msra.mxu0 0.0
    %267 = vmatprep.subr.mxu0 0.0
    %268 = vmatpush1.msra.mxu0 0.0
    %269 = vmatprep.subr.mxu0 0.0
    %270 = vmatpush1.msra.mxu0 0.0
    %271 = vmatprep.subr.mxu0 0.0
    %272 = vmatpush1.msra.mxu0 0.0
    %273 = vmatprep.subr.mxu0 0.0
    %274 = vmatpush1.msra.mxu0 0.0
    %275 = vmatprep.subr.mxu0 0.0
    %276 = vmatpush1.msra.mxu0 0.0
    %277 = vmatprep.subr.mxu0 0.0
    %278 = vmatpush1.msra.mxu0 0.0
    %279 = vmatprep.subr.mxu0 0.0
    %280 = vmatpush1.msra.mxu0 0.0
    %281 = vmatprep.subr.mxu0 0.0
    %282 = vmatpush1.msra.mxu0 0.0
    %283 = vmatprep.subr.mxu0 0.0
    %284 = vmatpush1.msra.mxu0 0.0
    %285 = vmatprep.subr.mxu0 0.0
    %286 = vmatpush1.msra.mxu0 0.0
    %287 = vmatprep.subr.mxu0 0.0
    %288 = vmatpush1.msra.mxu0 0.0
    %289 = vmatprep.mubr.f32.mxu0 0.0
    %290 = vmatmul.mubr.f32.gmra.mrb[0].mxu0 %v201
    %v291 = vpop.f32.mrb[0].mxu0
    %v292 = vadd.f32 %v223, %v291
    %v293 = vpop.f32.mrb[0].mxu0
    %294 = vdwg.mxu0
    %vm295 = vcmask 64512
    %296 = vst.msk [vmem:[#allocation2] sm:$0xff] %vm295, %v292
    // Predicated region
    $region30: #{tpu_custom_call.1} parent=1 // pred_check
      _
    $region31: #{tpu_custom_call.1} parent=1 // pred_check_branch
      %298 = sbr.rel (0) target = $region33
    $region32: #{tpu_custom_call.1} parent=1 // pred_region
      %s300 = ssub.s32 128, 128
      %301 = vsyncadd [#allocation3], %s300
      %s303 = sshll.u32 [#allocation2], 4
      %s304 = int_to_ptr.vmem [resolvable:$true] %s303
      %306 = dma.vmem_to_hbm [thread:$0]  %s304, 128, %s7, [#allocation3]
    $region33: #{tpu_custom_call.1} parent=1 // pred_fallthru
      _
    // Predicated region
    $region34: #{tpu_custom_call.1} parent=1 // pred_check
      _
    $region35: #{tpu_custom_call.1} parent=1 // pred_check_branch
      %308 = sbr.rel (0) target = $region37
    $region36: #{tpu_custom_call.1} parent=1 // pred_region
      %309 = dma.done [#allocation3], 128
    $region37: #{tpu_custom_call.1} parent=1 // pred_fallthru
      _
    %310 = vsyncpa [#allocation3], 1

</llo_original>
